<compile_context>
chip_gen: v5e
topology: v5e:2x2
jax: 0.10.0
libtpu: 0.0.40
codegen_flags: <defaults>
</compile_context>

<pallas_src>
import math

import jax
import jax.numpy as jnp
from jax.experimental import pallas as pl
from jax.experimental.pallas import tpu as pltpu


def critic_drr_kernel(xt_ref, w1_ref, b1_ref, w2_ref, b2_ref, o_ref):
    # Layer 1 on the MXU: (H, K) @ (K, TILE_B) -> (H, TILE_B), f32 accumulate.
    h = jnp.dot(w1_ref[...], xt_ref[...], preferred_element_type=jnp.float32)
    # Bias + ReLU epilogue in f32 on the VPU (b1 broadcasts along lanes).
    h = jnp.maximum(h + b1_ref[...], 0.0)
    # Layer 2 (H -> 1): VPU multiply + sublane reduction -> lane-dense (1, TILE_B).
    o_ref[...] = jnp.sum(h * w2_ref[...], axis=0, keepdims=True) + b2_ref[0]


def critic_drr_forward(state, action, w1, b1, w2, b2, *,
                       tile_b=8192, compute_dtype=jnp.bfloat16):
    """state: (B, S), action: (B, A).
    w1: (H, S+A) torch layout, b1: (H,), w2: (1, H), b2: (1,)."""
    B, S = state.shape
    A = action.shape[1]
    H = w1.shape[0]
    K = S + A

    # Glue (plain JAX; fuses into the concat copy that is needed anyway):
    # concat + cast + transpose so the kernel sees x^T with batch on lanes.
    x_t = jnp.concatenate(
        [state.T.astype(compute_dtype), action.T.astype(compute_dtype)],
        axis=0)                                             # (K, B) bf16
    w1_c = w1.astype(compute_dtype)                         # (H, K) torch layout
    b1_c = b1.reshape(H, 1).astype(jnp.float32)             # (H, 1)
    w2_c = w2.reshape(H, 1).astype(jnp.float32)             # (H, 1)
    b2_c = b2.reshape(1).astype(jnp.float32)                # (1,) scalar via SMEM

    # Batch tile: multiple of 128 (lane-dense output, aligned lanes), capped so
    # a double-buffered x^T tile stays a few MiB (fits v5e's 16 MiB scoped VMEM
    # default) while being large enough to amortize per-grid-step overhead.
    row_bytes = K * jnp.dtype(compute_dtype).itemsize
    vmem_cap = max(128, ((4 * 1024 * 1024) // row_bytes) // 128 * 128)
    tile_b = min(int(tile_b), vmem_cap)
    tile_b = max(128, (min(tile_b, pl.cdiv(B, 128) * 128) // 128) * 128)
    b_pad = pl.cdiv(B, tile_b) * tile_b
    if b_pad != B:
        x_t = jnp.pad(x_t, ((0, 0), (0, b_pad - B)))
    g = b_pad // tile_b

    out = pl.pallas_call(
        critic_drr_kernel,
        out_shape=jax.ShapeDtypeStruct((1, b_pad), jnp.float32),
        grid=(g,),
        in_specs=[
            pl.BlockSpec((K, tile_b), lambda i: (0, i)),        # x^T: streamed
            pl.BlockSpec((H, K), lambda i: (0, 0)),             # W1 : resident
            pl.BlockSpec((H, 1), lambda i: (0, 0)),             # b1 : resident
            pl.BlockSpec((H, 1), lambda i: (0, 0)),             # w2 : resident
            pl.BlockSpec(memory_space=pltpu.MemorySpace.SMEM),  # b2 : scalar
        ],
        out_specs=pl.BlockSpec((1, tile_b), lambda i: (0, i)),
        compiler_params=pltpu.CompilerParams(
            dimension_semantics=("parallel",)),                 # v7x: 2 TCs
    )(x_t, w1_c, b1_c, w2_c, b2_c)

    # (1, B_pad) lane-dense slab -> (B, 1) module output (padding lanes dropped).
    return out[0, :B].reshape(B, 1)


def init_params(key, state_repr_dim, action_emb_dim, hidden_dim):
    """Deterministic init matching the PyTorch module's shapes.
    Weights: kaiming_uniform_ (a=0, fan_in)  -> U(-sqrt(6/fan_in), sqrt(6/fan_in))
    Biases : PyTorch nn.Linear default        -> U(-1/sqrt(fan_in), 1/sqrt(fan_in))."""
    k1, k2, k3, k4 = jax.random.split(key, 4)
    in1 = state_repr_dim + action_emb_dim
    bnd1 = math.sqrt(6.0 / in1)
    w1 = jax.random.uniform(k1, (hidden_dim, in1), jnp.float32, -bnd1, bnd1)
    bb1 = 1.0 / math.sqrt(in1)
    b1 = jax.random.uniform(k2, (hidden_dim,), jnp.float32, -bb1, bb1)

    bnd2 = math.sqrt(6.0 / hidden_dim)
    w2 = jax.random.uniform(k3, (1, hidden_dim), jnp.float32, -bnd2, bnd2)
    bb2 = 1.0 / math.sqrt(hidden_dim)
    b2 = jax.random.uniform(k4, (1,), jnp.float32, -bb2, bb2)
    return w1, b1, w2, b2


if __name__ == "__main__":
    # Small shapes consistent with the module's forward.
    batch = 2
    state_repr_dim = 24
    action_emb_dim = 8
    hidden_dim = 32

    key = jax.random.PRNGKey(0)
    k_s, k_a, k_p = jax.random.split(key, 3)
    state = jax.random.normal(k_s, (batch, state_repr_dim), jnp.float32)
    action = jax.random.normal(k_a, (batch, action_emb_dim), jnp.float32)
    w1, b1, w2, b2 = init_params(k_p, state_repr_dim, action_emb_dim, hidden_dim)

    fwd = jax.jit(lambda s, a: critic_drr_forward(s, a, w1, b1, w2, b2))
    out = jax.block_until_ready(fwd(state, action))

    # Pure-JAX f32 reference (same math as the PyTorch module). The kernel's
    # MXU matmul uses bf16 operands (f32 accumulate) -> bf16-level tolerance.
    x = jnp.concatenate([state, action], axis=1)
    ref = jnp.maximum(x @ w1.T + b1, 0.0) @ w2.T + b2
    assert out.shape == (batch, 1)
    assert jnp.allclose(out, ref, atol=5e-2, rtol=5e-2)

    print("KERNEL_OK")
</pallas_src>

<mosaic_0001>
module attributes {stable_mosaic.version = 11 : i64} {
  func.func @critic_drr_kernel(%arg0: i32, %arg1: memref<32x128xbf16, #tpu.memory_space<vmem>>, %arg2: memref<32x32xbf16, #tpu.memory_space<vmem>>, %arg3: memref<32x1xf32, #tpu.memory_space<vmem>>, %arg4: memref<32x1xf32, #tpu.memory_space<vmem>>, %arg5: memref<1xf32, #tpu.memory_space<smem>>, %arg6: memref<1x128xf32, #tpu.memory_space<vmem>>) attributes {dimension_semantics = [#tpu.dimension_semantics<parallel>], iteration_bounds = array<i64: 1>, scalar_prefetch = 0 : i64, scratch_operands = 0 : i64, tpu.core_type = #tpu.core_type<tc>, window_params = [{transform_indices = @transform_0, window_bounds = array<i64: 32, 128>}, {pipeline_mode = #tpu.pipeline_mode<synchronous>, transform_indices = @transform_1, window_bounds = array<i64: 32, 32>}, {pipeline_mode = #tpu.pipeline_mode<synchronous>, transform_indices = @transform_2, window_bounds = array<i64: 32, 1>}, {pipeline_mode = #tpu.pipeline_mode<synchronous>, transform_indices = @transform_3, window_bounds = array<i64: 32, 1>}, {transform_indices = @transform_4, window_bounds = array<i64: 1>}, {transform_indices = @transform_5, window_bounds = array<i64: 1, 128>}]} {
    %c0 = arith.constant 0 : index
    %c0_0 = arith.constant 0 : index
    %0 = vector.load %arg2[%c0, %c0_0] : memref<32x32xbf16, #tpu.memory_space<vmem>>, vector<32x32xbf16>
    %c0_1 = arith.constant 0 : index
    %c0_2 = arith.constant 0 : index
    %1 = vector.load %arg1[%c0_1, %c0_2] : memref<32x128xbf16, #tpu.memory_space<vmem>>, vector<32x128xbf16>
    %cst = arith.constant dense<0.000000e+00> : vector<32x128xf32>
    %2 = tpu.matmul %0, %1, %cst {dimension_numbers = #tpu.dot_dimension_numbers<[1], [0], [0], [1], [0, 0, 1, 1], [], []>} : vector<32x32xbf16>, vector<32x128xbf16>, vector<32x128xf32> -> vector<32x128xf32>
    %c0_3 = arith.constant 0 : index
    %c0_4 = arith.constant 0 : index
    %3 = vector.load %arg3[%c0_3, %c0_4] : memref<32x1xf32, #tpu.memory_space<vmem>>, vector<32x1xf32>
    %4 = vector.broadcast %3 : vector<32x1xf32> to vector<32x128xf32>
    %5 = arith.addf %2, %4 : vector<32x128xf32>
    %cst_5 = arith.constant 0.000000e+00 : f32
    %6 = vector.broadcast %cst_5 : f32 to vector<32x128xf32>
    %7 = arith.maximumf %5, %6 : vector<32x128xf32>
    %c0_6 = arith.constant 0 : index
    %c0_7 = arith.constant 0 : index
    %8 = vector.load %arg4[%c0_6, %c0_7] : memref<32x1xf32, #tpu.memory_space<vmem>>, vector<32x1xf32>
    %9 = vector.broadcast %8 : vector<32x1xf32> to vector<32x128xf32>
    %10 = arith.mulf %7, %9 : vector<32x128xf32>
    %cst_8 = arith.constant dense<0.000000e+00> : vector<128xf32>
    %11 = vector.multi_reduction <add>, %10, %cst_8 [0] : vector<32x128xf32> to vector<128xf32>
    %12 = vector.shape_cast %11 : vector<128xf32> to vector<1x128xf32>
    %c0_9 = arith.constant 0 : index
    %13 = memref.load %arg5[%c0_9] : memref<1xf32, #tpu.memory_space<smem>>
    %14 = vector.broadcast %13 : f32 to vector<1x128xf32>
    %15 = arith.addf %12, %14 : vector<1x128xf32>
    %c0_10 = arith.constant 0 : index
    %c0_11 = arith.constant 0 : index
    %16 = vector.load %arg6[%c0_10, %c0_11] : memref<1x128xf32, #tpu.memory_space<vmem>>, vector<1x128xf32>
    tpu.vector_store %arg6[%c0_10, %c0_11], %15 {strides = array<i32>} : memref<1x128xf32, #tpu.memory_space<vmem>>, vector<1x128xf32>,
    return
  }
  func.func @transform_0(%arg0: i32) -> (i32, i32) {
    %c0_i32 = arith.constant 0 : i32
    %c0_i32_0 = arith.constant 0 : i32
    return %c0_i32, %arg0 : i32, i32
  }
  func.func @transform_1(%arg0: i32) -> (i32, i32) {
    %c0_i32 = arith.constant 0 : i32
    %c0_i32_0 = arith.constant 0 : i32
    %c0_i32_1 = arith.constant 0 : i32
    return %c0_i32, %c0_i32_0 : i32, i32
  }
  func.func @transform_2(%arg0: i32) -> (i32, i32) {
    %c0_i32 = arith.constant 0 : i32
    %c0_i32_0 = arith.constant 0 : i32
    %c0_i32_1 = arith.constant 0 : i32
    return %c0_i32, %c0_i32_0 : i32, i32
  }
  func.func @transform_3(%arg0: i32) -> (i32, i32) {
    %c0_i32 = arith.constant 0 : i32
    %c0_i32_0 = arith.constant 0 : i32
    %c0_i32_1 = arith.constant 0 : i32
    return %c0_i32, %c0_i32_0 : i32, i32
  }
  func.func @transform_4(%arg0: i32) -> i32 {
    %c0_i32 = arith.constant 0 : i32
    %c0_i32_0 = arith.constant 0 : i32
    return %c0_i32 : i32
  }
  func.func @transform_5(%arg0: i32) -> (i32, i32) {
    %c0_i32 = arith.constant 0 : i32
    %c0_i32_0 = arith.constant 0 : i32
    return %c0_i32, %arg0 : i32, i32
  }
}

</mosaic_0001>

<llo_original>
// kernel: _lambda_.1
$region0: #{_lambda_.1}
  #allocation0 [shape = 'u32[]', space=smem, size = 0x4, offset = 0x4, fixed_abs, tag = 'smem constant byte address 0x4 - core index']
  #allocation1 [shape = 'u32[72,128]{1,0:T(1,128)}', space=vmem, size = 0x9000, scoped, tag = 'internal scratch']
  #allocation2 [shape = 'f32[1]{0:T(128)S(6)}', space=smem, size = 0x200, scoped, tag = 'scoped memory for _lambda_.1']
  %s0 = inlined_call_operand.vmem [shape: bf16[32,128], index: 0, kind: input, shape index: {}]
  %s1 = inlined_call_operand.vmem [shape: bf16[32,32], index: 1, kind: input, shape index: {}]
  %s2 = inlined_call_operand.vmem [shape: f32[32,1], index: 2, kind: input, shape index: {}]
  %s3 = inlined_call_operand.hbm [shape: f32[32,1], index: 3, kind: input, shape index: {}]
  %s4 = inlined_call_operand.<no memory space> [shape: f32[1], index: 4, kind: input, shape index: {}]
  %s5 = inlined_call_operand.vmem [shape: f32[1,128], index: 5, kind: output, shape index: {}]
  %s6 = sld [smem:[#allocation0]]
  $region34: #{_lambda_.1} parent=0
    _
  %s8 = ssub.s32 1, %s6
  %s9 = scalar_select 0, %s8, %s6
  %10 = sst [smem:[#allocation2]] %s4
  $region1: #{_lambda_.1} parent=0
    #allocation3 [shape = 'u8[16384]{0}', space=vmem, size = 0x4000, scoped, tag = 'input window, operand 3, single buffered']
    #allocation4 [shape = 's32[1]{0}', space=sflag, size = 0x4, scoped, tag = 'scoped memory for _lambda_.1']
    %11 = vsyncpa [#allocation4], 0
    // Predicated region
    $region2: #{_lambda_.1} parent=1 // pred_check
      _
    $region3: #{_lambda_.1} parent=1 // pred_check_branch
      %13 = sbr.rel (0) target = $region5
    $region4: #{_lambda_.1} parent=1 // pred_region
      _
    $region5: #{_lambda_.1} parent=1 // pred_fallthru
      _
    // Predicated region
    $region6: #{_lambda_.1} parent=1 // pred_check
      _
    $region7: #{_lambda_.1} parent=1 // pred_check_branch
      %15 = sbr.rel (0) target = $region9
    $region8: #{_lambda_.1} parent=1 // pred_region
      _
    $region9: #{_lambda_.1} parent=1 // pred_fallthru
      _
    // Predicated region
    $region10: #{_lambda_.1} parent=1 // pred_check
      _
    $region11: #{_lambda_.1} parent=1 // pred_check_branch
      %17 = sbr.rel (0) target = $region13
    $region12: #{_lambda_.1} parent=1 // pred_region
      _
    $region13: #{_lambda_.1} parent=1 // pred_fallthru
      _
    // Predicated region
    $region14: #{_lambda_.1} parent=1 // pred_check
      _
    $region15: #{_lambda_.1} parent=1 // pred_check_branch
      %19 = sbr.rel (0) target = $region17
    $region16: #{_lambda_.1} parent=1 // pred_region
      %21 = vsyncadd [#allocation4], 0
      %s22 = sshll.u32 %s3, 4
      %s23 = int_to_ptr.hbm [resolvable:$true] %s22
      %s24 = sshll.u32 [#allocation3], 4
      %s25 = int_to_ptr.vmem [resolvable:$true] %s24
      %30 = dma.hbm_to_vmem [thread:$0]  %s23, 512, %s25, [#allocation4], 128, 128, 8
    $region17: #{_lambda_.1} parent=1 // pred_fallthru
      _
    // Predicated region
    $region18: #{_lambda_.1} parent=1 // pred_check
      _
    $region19: #{_lambda_.1} parent=1 // pred_check_branch
      %32 = sbr.rel (0) target = $region21
    $region20: #{_lambda_.1} parent=1 // pred_region
      _
    $region21: #{_lambda_.1} parent=1 // pred_fallthru
      _
    // Predicated region
    $region22: #{_lambda_.1} parent=1 // pred_check
      _
    $region23: #{_lambda_.1} parent=1 // pred_check_branch
      %34 = sbr.rel (0) target = $region25
    $region24: #{_lambda_.1} parent=1 // pred_region
      %36 = dma.done [#allocation4], 512
    $region25: #{_lambda_.1} parent=1 // pred_fallthru
      _
    %v38 = vld [vmem:[%s1] sm:$0xf]
    %v39 = vld [vmem:[%s1 + $0x4] sm:$0xf]
    %v40 = vld [vmem:[%s1 + $0x8] sm:$0xf]
    %v41 = vld [vmem:[%s1 + $0xc] sm:$0xf]
    %v42 = vld [vmem:[%s0] sm:$0xf]
    %v43 = vld [vmem:[%s0 + $0x4] sm:$0xf]
    %v44 = vld [vmem:[%s0 + $0x8] sm:$0xf]
    %v45 = vld [vmem:[%s0 + $0xc] sm:$0xf]
    %v46 = vld [vmem:[%s2] sm:$0xff]
    %v47 = vld [vmem:[%s2 + $0x8] sm:$0xff]
    %v48 = vld [vmem:[%s2 + $0x10] sm:$0xff]
    %v49 = vld [vmem:[%s2 + $0x18] sm:$0xff]
    %51 = vset.pattern.permute.xlu0 0
    %52 = vperm.xlu0 %51, %v46
    %v53 = vpop.permute.xlu0 %52
    %56 = vset.pattern.permute.xlu0 0
    %57 = vperm.xlu0 %56, %v47
    %v58 = vpop.permute.xlu0 %57
    %61 = vset.pattern.permute.xlu0 0
    %62 = vperm.xlu0 %61, %v48
    %v63 = vpop.permute.xlu0 %62
    %66 = vset.pattern.permute.xlu0 0
    %67 = vperm.xlu0 %66, %v49
    %v68 = vpop.permute.xlu0 %67
    %v74 = vunpack.c.l.b16 %v38
    %v75 = vunpack.c.l.b16 %v39
    %v76 = vunpack.c.l.b16 %v40
    %v77 = vunpack.c.l.b16 %v41
    %v78 = vpack.c.b16 %v75, %v74
    %v79 = vpack.c.b16 %v77, %v76
    %v84 = vunpack.c.l.b16 %v42
    %v85 = vunpack.c.l.b16 %v43
    %v86 = vunpack.c.l.b16 %v44
    %v87 = vunpack.c.l.b16 %v45
    %v88 = vpack.c.b16 %v85, %v84
    %v89 = vpack.c.b16 %v87, %v86
    %vm92 = vcmask 261120
    %v94 = vsel %vm92, %v78, 0
    %v97 = vsel %vm92, %v79, 0
    %99 = vmatpush.bf16.msra.mxu0 0
    %100 = vmatpush.bf16.msra.mxu0 0
    %101 = vmatpush.bf16.msra.mxu0 0
    %102 = vmatpush.bf16.msra.mxu0 0
    %103 = vmatpush.bf16.msra.mxu0 0
    %104 = vmatpush.bf16.msra.mxu0 0
    %105 = vmatpush.bf16.msra.mxu0 %v89
    %106 = vmatpush.bf16.msra.mxu0 %v88
    %107 = vmatmul.bf16.gmra.mxu0 %v94
    %v108 = vpop.f32.mrf.mxu0
    %v109 = vadd.f32 %v53, %v108
    %v110 = vpop.f32.mrf.mxu0
    %v111 = vadd.f32 %v58, %v110
    %112 = vmatmul.bf16.gmra.mxu0 %v97
    %v113 = vpop.f32.mrf.mxu0
    %v114 = vadd.f32 %v63, %v113
    %v115 = vpop.f32.mrf.mxu0
    %v116 = vadd.f32 %v68, %v115
    %117 = vdwg.mxu0
    %v118 = vmax.f32 %v109, 0.0
    %v119 = vmax.f32 %v111, 0.0
    %v120 = vmax.f32 %v114, 0.0
    %v121 = vmax.f32 %v116, 0.0
    %v122 = vld [vmem:[#allocation3] sm:$0xff]
    %v123 = vld [vmem:[#allocation3 + $0x8] sm:$0xff]
    %v124 = vld [vmem:[#allocation3 + $0x10] sm:$0xff]
    %v125 = vld [vmem:[#allocation3 + $0x18] sm:$0xff]
    %127 = vset.pattern.permute.xlu0 0
    %128 = vperm.xlu0 %127, %v122
    %v129 = vpop.permute.xlu0 %128
    %132 = vset.pattern.permute.xlu0 0
    %133 = vperm.xlu0 %132, %v123
    %v134 = vpop.permute.xlu0 %133
    %137 = vset.pattern.permute.xlu0 0
    %138 = vperm.xlu0 %137, %v124
    %v139 = vpop.permute.xlu0 %138
    %142 = vset.pattern.permute.xlu0 0
    %143 = vperm.xlu0 %142, %v125
    %v144 = vpop.permute.xlu0 %143
    %v146 = vmul.f32 %v118, %v129
    %v147 = vmul.f32 %v119, %v134
    %v148 = vmul.f32 %v120, %v139
    %v149 = vmul.f32 %v121, %v144
    %v150 = vadd.f32 %v146, %v147
    %v151 = vadd.f32 %v150, %v148
    %v152 = vadd.f32 %v151, %v149
    %v153 = vrot.slane %v152, 4
    %v154 = vadd.f32 %v152, %v153
    %v155 = vrot.slane %v154, 2
    %v156 = vadd.f32 %v154, %v155
    %v157 = vrot.slane %v156, 1
    %v158 = vadd.f32 %v156, %v157
    %s159 = sld [smem:[#allocation2]]
    %v160 = vstv %s159
    %v161 = vadd.f32 %v158, %v160
    %162 = vst [vmem:[%s5] sm:$0x1] %v161
    // Predicated region
    $region26: #{_lambda_.1} parent=1 // pred_check
      _
    $region27: #{_lambda_.1} parent=1 // pred_check_branch
      %164 = sbr.rel (0) target = $region29
    $region28: #{_lambda_.1} parent=1 // pred_region
      _
    $region29: #{_lambda_.1} parent=1 // pred_fallthru
      _
    // Predicated region
    $region30: #{_lambda_.1} parent=1 // pred_check
      _
    $region31: #{_lambda_.1} parent=1 // pred_check_branch
      %166 = sbr.rel (0) target = $region33
    $region32: #{_lambda_.1} parent=1 // pred_region
      _
    $region33: #{_lambda_.1} parent=1 // pred_fallthru
      _
    %167 = vsyncpa [#allocation4], 1

</llo_original>
